<compile_context>
chip_gen: v6e
topology: v6e:2x2x1
jax: 0.10.0
libtpu: 0.0.40
codegen_flags: <defaults>
</compile_context>

<pallas_src>
import functools

import jax
import jax.numpy as jnp
from jax import lax
from jax.experimental import pallas as pl
from jax.experimental.pallas import tpu as pltpu


def _logitnorm_loss_kernel(x_ref, tgt_ref, loss_ref, *, t, n_valid, tm):
    """One grid step: per-row L2-normalize + temperature + softmax NLL.

    Writes per-row losses (tail-padding rows masked to 0) into this step's own
    output block.  No cross-step carry, so grid steps are fully independent.
    """
    i = pl.program_id(0)

    x = x_ref[...].astype(jnp.float32)                                  # (TM, C)

    # L2 norm along classes (+ eps).  One divide per ROW, then VPU multiplies
    # (instead of a TMxC elementwise divide).
    norms = jnp.sqrt(jnp.sum(x * x, axis=-1, keepdims=True)) + 1e-7     # (TM, 1)
    inv = jnp.float32(1.0 / t) / norms                                  # (TM, 1)
    z = x * inv                                                         # (TM, C)

    # Numerically-stable log-sum-exp.
    m = jnp.max(z, axis=-1, keepdims=True)                              # (TM, 1)
    lse = m + jnp.log(jnp.sum(jnp.exp(z - m), axis=-1, keepdims=True))  # (TM, 1)

    # Gather z[row, target[row]] via one-hot mask (no dynamic gather on TPU).
    tgt = tgt_ref[...]                                                  # (TM, 1)
    col = lax.broadcasted_iota(jnp.int32, z.shape, 1)                   # (TM, C)
    picked = jnp.sum(jnp.where(col == tgt, z, 0.0), axis=-1, keepdims=True)

    # Zero out tail-padding rows so they contribute nothing to the reduction.
    row = lax.broadcasted_iota(jnp.int32, (tm, 1), 0) + i * tm
    loss_ref[...] = jnp.where(row < n_valid, lse - picked, 0.0)


def logitnorm_loss(x, target, *, t=1.0, reduction="mean", tm=512,
                   vmem_limit_bytes=32 * 1024 * 1024):
    """Pallas implementation of LogitNormLoss.forward.

    x:      (N, C) float logits
    target: (N,)   integer class labels
    reduction: 'mean' | 'sum' | 'none'
    """
    N, C = x.shape

    # --- pick a row tile -----------------------------------------------------
    # Cap tm so that a double-buffered (tm, C) f32 input tile stays well inside
    # the scoped-VMEM budget (conservative enough for v7x's 64 MiB physical
    # VMEM as well as v5e/v6e); never larger than the (8-rounded) batch.
    per_buffer_budget = 4 * 1024 * 1024                     # bytes / input buffer
    tm_cap = max(8, (per_buffer_budget // (C * 4)) // 8 * 8)
    tm_eff = max(8, min(int(tm), tm_cap, pl.cdiv(N, 8) * 8))
    tm_eff = (tm_eff // 8) * 8

    n_pad = pl.cdiv(N, tm_eff) * tm_eff
    grid = (n_pad // tm_eff,)

    xp = x if n_pad == N else jnp.pad(x, ((0, n_pad - N), (0, 0)))
    tgt2d = target.astype(jnp.int32).reshape(N, 1)
    if n_pad != N:
        tgt2d = jnp.pad(tgt2d, ((0, n_pad - N), (0, 0)))

    kernel = functools.partial(_logitnorm_loss_kernel, t=float(t), n_valid=N,
                               tm=tm_eff)

    cost = pl.CostEstimate(
        flops=8 * N * C,
        transcendentals=N * C + 2 * N,                      # exp per elem, sqrt/log per row
        bytes_accessed=N * C * x.dtype.itemsize + N * 4 + N * 4,
    )

    losses = pl.pallas_call(
        kernel,
        out_shape=jax.ShapeDtypeStruct((n_pad, 1), jnp.float32),
        grid_spec=pltpu.PrefetchScalarGridSpec(
            num_scalar_prefetch=0,
            grid=grid,
            in_specs=[
                pl.BlockSpec((tm_eff, C), lambda i: (i, 0)),   # logits tile
                pl.BlockSpec((tm_eff, 1), lambda i: (i, 0)),   # target tile
            ],
            out_specs=pl.BlockSpec((tm_eff, 1), lambda i: (i, 0)),
        ),
        compiler_params=pltpu.CompilerParams(
            dimension_semantics=("parallel",),    # no carried state -> megacore OK
            vmem_limit_bytes=vmem_limit_bytes,
        ),
        cost_estimate=cost,
    )(xp, tgt2d)

    losses = losses[:, 0]
    if reduction == "mean":
        return jnp.sum(losses) / jnp.float32(N)   # padded rows are exactly zero
    if reduction == "sum":
        return jnp.sum(losses)
    return losses[:N]                             # 'none'


def _reference(x, target, t=1.0, reduction="mean"):
    x = x.astype(jnp.float32)
    norms = jnp.sqrt(jnp.sum(x * x, axis=-1, keepdims=True)) + 1e-7
    z = (x / norms) / t
    logp = jax.nn.log_softmax(z, axis=-1)
    nll = -jnp.take_along_axis(logp, target[:, None].astype(jnp.int32), axis=-1)[:, 0]
    if reduction == "mean":
        return jnp.mean(nll)
    if reduction == "sum":
        return jnp.sum(nll)
    return nll


if __name__ == "__main__":
    key = jax.random.PRNGKey(0)
    kx, kt, kx2, kt2 = jax.random.split(key, 4)

    # Case 1: tile-aligned batch, mean reduction.
    N, C = 16, 32
    x = jax.random.normal(kx, (N, C), dtype=jnp.float32)
    target = jax.random.randint(kt, (N,), 0, C, dtype=jnp.int32)

    loss = jax.block_until_ready(logitnorm_loss(x, target, t=1.0, reduction="mean"))
    ref = _reference(x, target, t=1.0, reduction="mean")
    assert jnp.allclose(loss, ref, atol=1e-5, rtol=1e-5), (loss, ref)

    # Case 2: ragged batch (exercises tail-row masking) + sum reduction + t!=1.
    N2, C2 = 13, 40
    x2 = jax.random.normal(kx2, (N2, C2), dtype=jnp.float32)
    target2 = jax.random.randint(kt2, (N2,), 0, C2, dtype=jnp.int32)

    loss2 = jax.block_until_ready(logitnorm_loss(x2, target2, t=2.0, reduction="sum"))
    ref2 = _reference(x2, target2, t=2.0, reduction="sum")
    assert jnp.allclose(loss2, ref2, atol=1e-5, rtol=1e-5), (loss2, ref2)

    # Case 3: 'none' reduction (per-sample losses).
    loss3 = jax.block_until_ready(logitnorm_loss(x2, target2, t=2.0, reduction="none"))
    ref3 = _reference(x2, target2, t=2.0, reduction="none")
    assert jnp.allclose(loss3, ref3, atol=1e-5, rtol=1e-5), (loss3, ref3)

    print("KERNEL_OK")
</pallas_src>

<mosaic_0001>
module attributes {stable_mosaic.version = 11 : i64} {
  func.func @_logitnorm_loss_kernel(%arg0: i32, %arg1: memref<16x32xf32, #tpu.memory_space<vmem>>, %arg2: memref<16x1xi32, #tpu.memory_space<vmem>>, %arg3: memref<16x1xf32, #tpu.memory_space<vmem>>) attributes {dimension_semantics = [#tpu.dimension_semantics<parallel>], iteration_bounds = array<i64: 1>, scalar_prefetch = 0 : i64, scratch_operands = 0 : i64, tpu.core_type = #tpu.core_type<tc>, window_params = [{transform_indices = @transform_0, window_bounds = array<i64: 16, 32>}, {transform_indices = @transform_1, window_bounds = array<i64: 16, 1>}, {transform_indices = @transform_2, window_bounds = array<i64: 16, 1>}]} {
    %c0 = arith.constant 0 : index
    %c0_0 = arith.constant 0 : index
    %0 = vector.load %arg1[%c0, %c0_0] : memref<16x32xf32, #tpu.memory_space<vmem>>, vector<16x32xf32>
    %1 = arith.mulf %0, %0 : vector<16x32xf32>
    %cst = arith.constant dense<0.000000e+00> : vector<16xf32>
    %2 = vector.multi_reduction <add>, %1, %cst [1] : vector<16x32xf32> to vector<16xf32>
    %3 = vector.shape_cast %2 : vector<16xf32> to vector<16x1xf32>
    %4 = math.sqrt %3 : vector<16x1xf32>
    %cst_1 = arith.constant 1.000000e-07 : f32
    %5 = vector.broadcast %cst_1 : f32 to vector<16x1xf32>
    %6 = arith.addf %4, %5 : vector<16x1xf32>
    %cst_2 = arith.constant 1.000000e+00 : f32
    %7 = vector.broadcast %cst_2 : f32 to vector<16x1xf32>
    %8 = arith.divf %7, %6 : vector<16x1xf32>
    %9 = vector.broadcast %8 : vector<16x1xf32> to vector<16x32xf32>
    %10 = arith.mulf %0, %9 : vector<16x32xf32>
    %cst_3 = arith.constant dense<0xFF800000> : vector<16xf32>
    %11 = vector.multi_reduction <maximumf>, %10, %cst_3 [1] : vector<16x32xf32> to vector<16xf32>
    %12 = vector.shape_cast %11 : vector<16xf32> to vector<16x1xf32>
    %13 = vector.broadcast %12 : vector<16x1xf32> to vector<16x32xf32>
    %14 = arith.subf %10, %13 : vector<16x32xf32>
    %15 = math.exp %14 : vector<16x32xf32>
    %cst_4 = arith.constant dense<0.000000e+00> : vector<16xf32>
    %16 = vector.multi_reduction <add>, %15, %cst_4 [1] : vector<16x32xf32> to vector<16xf32>
    %17 = vector.shape_cast %16 : vector<16xf32> to vector<16x1xf32>
    %18 = math.log %17 : vector<16x1xf32>
    %19 = arith.addf %12, %18 : vector<16x1xf32>
    %c0_5 = arith.constant 0 : index
    %c0_6 = arith.constant 0 : index
    %20 = vector.load %arg2[%c0_5, %c0_6] : memref<16x1xi32, #tpu.memory_space<vmem>>, vector<16x1xi32>
    %21 = tpu.iota {dimensions = array<i32: 1>} : vector<16x32xi32>
    %22 = vector.broadcast %20 : vector<16x1xi32> to vector<16x32xi32>
    %23 = arith.cmpi eq, %21, %22 : vector<16x32xi32>
    %cst_7 = arith.constant 0.000000e+00 : f32
    %24 = vector.broadcast %cst_7 : f32 to vector<16x32xf32>
    %25 = arith.select %23, %10, %24 : vector<16x32xi1>, vector<16x32xf32>
    %cst_8 = arith.constant dense<0.000000e+00> : vector<16xf32>
    %26 = vector.multi_reduction <add>, %25, %cst_8 [1] : vector<16x32xf32> to vector<16xf32>
    %27 = vector.shape_cast %26 : vector<16xf32> to vector<16x1xf32>
    %28 = tpu.iota {dimensions = array<i32: 0>} : vector<16x1xi32>
    %c16_i32 = arith.constant 16 : i32
    %29 = arith.muli %arg0, %c16_i32 : i32
    %30 = vector.broadcast %29 : i32 to vector<16x1xi32>
    %31 = arith.addi %28, %30 : vector<16x1xi32>
    %c16_i32_9 = arith.constant 16 : i32
    %32 = vector.broadcast %c16_i32_9 : i32 to vector<16x1xi32>
    %33 = arith.cmpi slt, %31, %32 : vector<16x1xi32>
    %34 = arith.subf %19, %27 : vector<16x1xf32>
    %cst_10 = arith.constant 0.000000e+00 : f32
    %35 = vector.broadcast %cst_10 : f32 to vector<16x1xf32>
    %36 = arith.select %33, %34, %35 : vector<16x1xi1>, vector<16x1xf32>
    %c0_11 = arith.constant 0 : index
    %c0_12 = arith.constant 0 : index
    %37 = vector.load %arg3[%c0_11, %c0_12] : memref<16x1xf32, #tpu.memory_space<vmem>>, vector<16x1xf32>
    tpu.vector_store %arg3[%c0_11, %c0_12], %36 {strides = array<i32>} : memref<16x1xf32, #tpu.memory_space<vmem>>, vector<16x1xf32>,
    return
  }
  func.func @transform_0(%arg0: i32) -> (i32, i32) {
    %c0_i32 = arith.constant 0 : i32
    %c0_i32_0 = arith.constant 0 : i32
    return %arg0, %c0_i32 : i32, i32
  }
  func.func @transform_1(%arg0: i32) -> (i32, i32) {
    %c0_i32 = arith.constant 0 : i32
    %c0_i32_0 = arith.constant 0 : i32
    return %arg0, %c0_i32 : i32, i32
  }
  func.func @transform_2(%arg0: i32) -> (i32, i32) {
    %c0_i32 = arith.constant 0 : i32
    %c0_i32_0 = arith.constant 0 : i32
    return %arg0, %c0_i32 : i32, i32
  }
}

</mosaic_0001>

<llo_original>
// kernel: tpu_custom_call.1
$region0: #{tpu_custom_call.1}
  #allocation0 [shape = 'u32[]', space=smem, size = 0x4, offset = 0x4, fixed_abs, tag = 'smem constant byte address 0x4 - core index']
  #allocation1 [shape = 'u32[144,128]{1,0:T(1,128)}', space=vmem, size = 0x12000, scoped, tag = 'internal scratch']
  %s0 = inlined_call_operand.vmem [shape: f32[16,32], index: 0, kind: input, shape index: {}]
  %s1 = inlined_call_operand.vmem [shape: s32[16,1], index: 1, kind: input, shape index: {}]
  %s2 = inlined_call_operand.vmem [shape: f32[16,1], index: 2, kind: output, shape index: {}]
  %s3 = sld [smem:[#allocation0]]
  $region18: #{tpu_custom_call.1} parent=0
    _
  %s5 = ssub.s32 1, %s3
  %s6 = scalar_select 0, %s5, %s3
  // Predicated region
  $region2: #{tpu_custom_call.1} parent=0 // pred_check
    _
  $region3: #{tpu_custom_call.1} parent=0 // pred_check_branch
    %8 = sbr.rel (0) target = $region5
  $region4: #{tpu_custom_call.1} parent=0 // pred_region
    _
  $region5: #{tpu_custom_call.1} parent=0 // pred_fallthru
    _
  // Predicated region
  $region6: #{tpu_custom_call.1} parent=0 // pred_check
    _
  $region7: #{tpu_custom_call.1} parent=0 // pred_check_branch
    %10 = sbr.rel (0) target = $region9
  $region8: #{tpu_custom_call.1} parent=0 // pred_region
    _
  $region9: #{tpu_custom_call.1} parent=0 // pred_fallthru
    _
  %v11 = vld [vmem:[%s0] sm:$0xff]
  %v12 = vld [vmem:[%s0 + $0x8] sm:$0xff]
  %v13 = vmul.f32 %v11, %v11
  %v14 = vmul.f32 %v12, %v12
  %vm15 = vcmask 261120
  %v16 = vsel %vm15, %v13, 0.0
  %17 = vadd.xlane.f32.xlu0 %v16
  %v18 = vpop.xlane.xlu0 %17
  %v19 = vsel %vm15, %v14, 0.0
  %20 = vadd.xlane.f32.xlu0 %v19
  %v21 = vpop.xlane.xlu0 %20
  %v22 = vrsqrt.pop %v18
  %v23 = vmul.f32 %v18, %v22
  %vm24 = vcmp.eq.f32.partialorder %v18, inf
  %v25 = vsel %vm24, %v18, %v23
  %vm26 = vcmp.eq.f32.partialorder %v18, 0.0
  %v27 = vand.u32 %v18, 2147483648
  %v28 = vsel %vm26, %v27, %v25
  %v29 = vrsqrt.pop %v21
  %v30 = vmul.f32 %v21, %v29
  %vm31 = vcmp.eq.f32.partialorder %v21, inf
  %v32 = vsel %vm31, %v21, %v30
  %vm33 = vcmp.eq.f32.partialorder %v21, 0.0
  %v34 = vand.u32 %v21, 2147483648
  %v35 = vsel %vm33, %v34, %v32
  %v36 = vadd.f32 %v28, 1e-07
  %v37 = vadd.f32 %v35, 1e-07
  %v38 = vrcp.pop %v36
  %v39 = vmul.f32 1.0, %v38
  %v40 = vrcp.pop %v37
  %v41 = vmul.f32 1.0, %v40
  %v42 = vmul.f32 %v11, %v39
  %v43 = vmul.f32 %v12, %v41
  %v44 = vsel %vm15, %v42, -inf
  %45 = vmax.xlane.f32.xlu0 %v44
  %v46 = vpop.xlane.xlu0 %45
  %v47 = vsel %vm15, %v43, -inf
  %48 = vmax.xlane.f32.xlu0 %v47
  %v49 = vpop.xlane.xlu0 %48
  %v50 = vsub.f32 %v42, %v46
  %v51 = vsub.f32 %v43, %v49
  %v52 = vmul.f32 %v50, 1.442695
  %v53 = vpow.pop %v52
  %v54 = vmul.f32 %v51, 1.442695
  %v55 = vpow.pop %v54
  %v56 = vsel %vm15, %v53, 0.0
  %57 = vadd.xlane.f32.xlu0 %v56
  %v58 = vpop.xlane.xlu0 %57
  %v59 = vsel %vm15, %v55, 0.0
  %60 = vadd.xlane.f32.xlu0 %v59
  %v61 = vpop.xlane.xlu0 %60
  %v62 = vlog2.pop %v58
  %v63 = vmul.f32 %v62, 0.6931472
  %v64 = vlog2.pop %v61
  %v65 = vmul.f32 %v64, 0.6931472
  %v66 = vadd.f32 %v46, %v63
  %v67 = vadd.f32 %v49, %v65
  %v68 = vld [vmem:[%s1] sm:$0xff]
  %v69 = vld [vmem:[%s1 + $0x8] sm:$0xff]
  %v70 = vlaneseq
  %v71 = vand.u32 %v70, 127
  %72 = vset.pattern.permute.xlu0 0
  %73 = vperm.xlu0 %72, %v68
  %v74 = vpop.permute.xlu0 %73
  %75 = vset.pattern.permute.xlu0 0
  %76 = vperm.xlu0 %75, %v69
  %v77 = vpop.permute.xlu0 %76
  %vm78 = vcmp.eq.s32.totalorder %v71, %v74
  %vm79 = vcmp.eq.s32.totalorder %v71, %v77
  %v80 = vsel %vm78, %v42, 0.0
  %v81 = vsel %vm79, %v43, 0.0
  %v82 = vsel %vm15, %v80, 0.0
  %83 = vadd.xlane.f32.xlu0 %v82
  %v84 = vpop.xlane.xlu0 %83
  %v85 = vsel %vm15, %v81, 0.0
  %86 = vadd.xlane.f32.xlu0 %v85
  %v87 = vpop.xlane.xlu0 %86
  %v88 = vlaneseq
  %v89 = vshrl.u32 %v88, 7
  %v90 = vadd.s32 %v89, 8
  %s91 = smul.u32 0, 16
  %v92 = vstv %s91
  %v93 = vadd.s32 %v89, %v92
  %v94 = vadd.s32 %v90, %v92
  %vm95 = vcmp.lt.s32.totalorder %v93, 16
  %vm96 = vcmp.lt.s32.totalorder %v94, 16
  %v97 = vsub.f32 %v66, %v84
  %v98 = vsub.f32 %v67, %v87
  %v99 = vsel %vm95, %v97, 0.0
  %v100 = vsel %vm96, %v98, 0.0
  %vm101 = vcmask 7168
  %102 = vst.msk [vmem:[%s2] sm:$0xff] %vm101, %v99
  %103 = vst.msk [vmem:[%s2 + $0x8] sm:$0xff] %vm101, %v100
  // Predicated region
  $region10: #{tpu_custom_call.1} parent=0 // pred_check
    _
  $region11: #{tpu_custom_call.1} parent=0 // pred_check_branch
    %105 = sbr.rel (0) target = $region13
  $region12: #{tpu_custom_call.1} parent=0 // pred_region
    _
  $region13: #{tpu_custom_call.1} parent=0 // pred_fallthru
    _
  // Predicated region
  $region14: #{tpu_custom_call.1} parent=0 // pred_check
    _
  $region15: #{tpu_custom_call.1} parent=0 // pred_check_branch
    %107 = sbr.rel (0) target = $region17
  $region16: #{tpu_custom_call.1} parent=0 // pred_region
    _
  $region17: #{tpu_custom_call.1} parent=0 // pred_fallthru
    _

</llo_original>
